<compile_context>
chip_gen: v7x
topology: tpu7x:2x2x1
jax: 0.10.0
libtpu: 0.0.40
codegen_flags: <defaults>
</compile_context>

<pallas_src>
import functools

import jax
import jax.numpy as jnp
from jax.experimental import pallas as pl
from jax.experimental.pallas import tpu as pltpu

LANE = 128


# ----------------------------- Pallas kernel ------------------------------- #
def _conv_bn_lrelu_kernel(p_ref, w_ref, shift_ref, o_ref, *, slope):
    # p_ref:     (tm, K)      bf16 im2col patch tile
    # w_ref:     (K, Coutp)   bf16 BN-scale-folded conv weight
    # shift_ref: (1, Coutp)   f32  beta - mean * scale (zero-padded lanes)
    # o_ref:     (tm, Coutp)  f32  lane-dense output tile
    acc = jnp.dot(p_ref[...], w_ref[...], preferred_element_type=jnp.float32)
    y = acc + shift_ref[...]
    o_ref[...] = jnp.where(y > 0, y, slope * y).astype(o_ref.dtype)


def _pick_tm(M, tm_max):
    """Row-tile size: multiple of 128, as large as possible, but keep >= 2 grid
    blocks when M allows so both v7x TensorCores get work."""
    tm = min(tm_max, max(LANE, ((M + LANE - 1) // LANE) * LANE))
    if M > LANE:
        half = ((M // 2) // LANE) * LANE
        if half >= LANE:
            tm = min(tm, half)
    return tm


def conv_bn_lrelu_pallas(patches, w_flat, shift, *, slope=0.1, tm_max=512):
    """patches: (M, K) bf16, w_flat: (K, Coutp) bf16, shift: (1, Coutp) f32.
    Returns (M, Coutp) f32."""
    M, K = patches.shape
    Coutp = w_flat.shape[1]

    tm = _pick_tm(M, tm_max)
    n_blocks = (M + tm - 1) // tm
    Mp = n_blocks * tm
    if Mp != M:
        # Padded rows evaluate to LeakyReLU(shift); sliced off below.
        patches = jnp.pad(patches, ((0, Mp - M), (0, 0)))

    # Explicit VMEM budget (double-buffered inputs + output, plus headroom) so
    # the same tiling fits v7x's smaller 64 MiB VMEM without relying on
    # per-chip defaults.
    needed = (2 * tm * K * 2          # patches (bf16, double-buffered)
              + 2 * K * Coutp * 2     # weight  (bf16)
              + 2 * Coutp * 4         # shift   (f32)
              + 2 * tm * Coutp * 4)   # output  (f32, double-buffered)
    vmem_bytes = int(min(48 << 20, max(16 << 20, 4 * needed)))

    cost = pl.CostEstimate(
        flops=2 * Mp * K * Coutp,
        transcendentals=0,
        bytes_accessed=Mp * K * 2 + K * Coutp * 2 + Coutp * 4 + Mp * Coutp * 4)

    out = pl.pallas_call(
        functools.partial(_conv_bn_lrelu_kernel, slope=slope),
        out_shape=jax.ShapeDtypeStruct((Mp, Coutp), jnp.float32),
        grid_spec=pltpu.PrefetchScalarGridSpec(
            num_scalar_prefetch=0,
            grid=(n_blocks,),
            in_specs=[
                pl.BlockSpec((tm, K), lambda i: (i, 0)),
                pl.BlockSpec((K, Coutp), lambda i: (0, 0)),
                pl.BlockSpec((1, Coutp), lambda i: (0, 0)),
            ],
            out_specs=pl.BlockSpec((tm, Coutp), lambda i: (i, 0)),
        ),
        compiler_params=pltpu.CompilerParams(
            dimension_semantics=("parallel",),
            vmem_limit_bytes=vmem_bytes),
        cost_estimate=cost,
    )(patches, w_flat, shift)
    return out[:M]


# ------------------------------- JAX glue ----------------------------------- #
def im2col_nchw(x, kh, kw, stride, pad):
    """x: (N, C, H, W) -> (N*OH*OW, C*kh*kw) with feature order (c, kh, kw)."""
    N, C, H, W = x.shape
    OH = (H + 2 * pad - kh) // stride + 1
    OW = (W + 2 * pad - kw) // stride + 1
    xp = jnp.pad(x, ((0, 0), (0, 0), (pad, pad), (pad, pad)))
    cols = []
    for i in range(kh):
        for j in range(kw):
            cols.append(
                xp[:, :, i:i + stride * OH:stride, j:j + stride * OW:stride])
    pat = jnp.stack(cols, axis=2)          # (N, C, kh*kw, OH, OW)
    pat = pat.transpose(0, 3, 4, 1, 2)     # (N, OH, OW, C, kh*kw)
    return pat.reshape(N * OH * OW, C * kh * kw), OH, OW


def basic_conv_forward(x, weight, gamma, beta, run_mean, run_var,
                       *, stride, padding, lr=0.1, eps=1e-5):
    """BasicConv forward: Conv2d(bias=False) -> BatchNorm2d(eval) -> LeakyReLU."""
    # TODO(synk): BatchNorm2d is implemented in eval mode (running statistics);
    # training-mode batch statistics would need a separate reduction pass.
    # TODO(synk): im2col is still materialized in HBM (now in bf16); fully
    # fusing patch extraction into the kernel needs manual DMA with halo
    # handling and is left for a follow-up.
    N, Cin, H, W = x.shape
    Cout, _, KH, KW = weight.shape
    K = Cin * KH * KW
    Coutp = max(LANE, ((Cout + LANE - 1) // LANE) * LANE)

    # Fold BN scale into the conv weights in f32, then cast operands to bf16 so
    # the MXU runs natively; accumulation stays f32 inside the kernel.
    inv_std = 1.0 / jnp.sqrt(run_var + eps)
    scale = gamma * inv_std                                    # (Cout,)
    shift = beta - run_mean * scale                            # (Cout,)

    w_flat = (weight * scale[:, None, None, None]).reshape(Cout, K).T  # (K,Cout)
    w_flat = jnp.pad(w_flat, ((0, 0), (0, Coutp - Cout))).astype(jnp.bfloat16)
    shift_p = jnp.pad(shift, (0, Coutp - Cout)).reshape(1, Coutp).astype(jnp.float32)

    patches, OH, OW = im2col_nchw(x.astype(jnp.bfloat16), KH, KW, stride, padding)

    out = conv_bn_lrelu_pallas(patches, w_flat, shift_p, slope=lr)
    out = out[:, :Cout].reshape(N, OH, OW, Cout)
    # TODO(synk): final NHWC->NCHW transpose only matches the PyTorch layout;
    # an NHWC consumer could take `out` directly and skip this HBM pass.
    return out.transpose(0, 3, 1, 2)


# ------------------------------- references --------------------------------- #
def basic_conv_reference_f32(x, weight, gamma, beta, run_mean, run_var,
                             *, stride, padding, lr=0.1, eps=1e-5):
    y = jax.lax.conv_general_dilated(
        x, weight, window_strides=(stride, stride),
        padding=[(padding, padding), (padding, padding)],
        dimension_numbers=("NCHW", "OIHW", "NCHW"))
    scale = (gamma / jnp.sqrt(run_var + eps))[None, :, None, None]
    shift = (beta - run_mean * gamma / jnp.sqrt(run_var + eps))[None, :, None, None]
    y = y * scale + shift
    return jnp.where(y > 0, y, lr * y)


def basic_conv_reference_bf16(x, weight, gamma, beta, run_mean, run_var,
                              *, stride, padding, lr=0.1, eps=1e-5):
    scale = gamma / jnp.sqrt(run_var + eps)
    shift = beta - run_mean * scale
    w_scaled = (weight * scale[:, None, None, None]).astype(jnp.bfloat16)
    y = jax.lax.conv_general_dilated(
        x.astype(jnp.bfloat16), w_scaled, window_strides=(stride, stride),
        padding=[(padding, padding), (padding, padding)],
        dimension_numbers=("NCHW", "OIHW", "NCHW"),
        preferred_element_type=jnp.float32)
    y = y + shift[None, :, None, None]
    return jnp.where(y > 0, y, lr * y)


# --------------------------------- main -------------------------------------- #
if __name__ == "__main__":
    key = jax.random.PRNGKey(0)
    k1, k2, k3, k4, k5, k6 = jax.random.split(key, 6)

    # Module config: BasicConv(ind=4, outd=8, kr_size=3, stride=1, padding=1)
    N, Cin, H, W = 2, 4, 16, 16
    Cout, KH, KW = 8, 3, 3
    stride, padding, lr = 1, 1, 0.1

    x = jax.random.normal(k1, (N, Cin, H, W), dtype=jnp.float32)
    weight = jax.random.normal(k2, (Cout, Cin, KH, KW), dtype=jnp.float32) * 0.1
    gamma = 1.0 + 0.1 * jax.random.normal(k3, (Cout,), dtype=jnp.float32)
    beta = 0.1 * jax.random.normal(k4, (Cout,), dtype=jnp.float32)
    run_mean = 0.1 * jax.random.normal(k5, (Cout,), dtype=jnp.float32)
    run_var = jnp.abs(jax.random.normal(k6, (Cout,), dtype=jnp.float32)) + 0.5

    out = basic_conv_forward(x, weight, gamma, beta, run_mean, run_var,
                             stride=stride, padding=padding, lr=lr)
    out = jax.block_until_ready(out)
    assert out.shape == (N, Cout, H, W)

    # Tight check vs. a bf16-operand / f32-accumulation reference (same math).
    ref_bf16 = basic_conv_reference_bf16(x, weight, gamma, beta, run_mean,
                                         run_var, stride=stride,
                                         padding=padding, lr=lr)
    assert jnp.allclose(out, ref_bf16, atol=1e-2, rtol=1e-2), \
        "mismatch vs bf16 reference"

    # Loose check vs. the full-precision module semantics.
    ref_f32 = basic_conv_reference_f32(x, weight, gamma, beta, run_mean,
                                       run_var, stride=stride,
                                       padding=padding, lr=lr)
    assert jnp.allclose(out, ref_f32, atol=5e-2, rtol=5e-2), \
        "mismatch vs f32 reference"

    print("KERNEL_OK")
</pallas_src>

<mosaic_0001>
module attributes {stable_mosaic.version = 11 : i64} {
  func.func @_conv_bn_lrelu_kernel(%arg0: i32, %arg1: memref<256x36xbf16, #tpu.memory_space<vmem>>, %arg2: memref<36x128xbf16, #tpu.memory_space<vmem>>, %arg3: memref<1x128xf32, #tpu.memory_space<vmem>>, %arg4: memref<256x128xf32, #tpu.memory_space<vmem>>) attributes {dimension_semantics = [#tpu.dimension_semantics<parallel>], iteration_bounds = array<i64: 2>, scalar_prefetch = 0 : i64, scratch_operands = 0 : i64, tpu.core_type = #tpu.core_type<tc>, window_params = [{transform_indices = @transform_0, window_bounds = array<i64: 256, 36>}, {pipeline_mode = #tpu.pipeline_mode<synchronous>, transform_indices = @transform_1, window_bounds = array<i64: 36, 128>}, {pipeline_mode = #tpu.pipeline_mode<synchronous>, transform_indices = @transform_2, window_bounds = array<i64: 1, 128>}, {transform_indices = @transform_3, window_bounds = array<i64: 256, 128>}]} {
    %c0 = arith.constant 0 : index
    %c0_0 = arith.constant 0 : index
    %0 = vector.load %arg1[%c0, %c0_0] : memref<256x36xbf16, #tpu.memory_space<vmem>>, vector<256x36xbf16>
    %c0_1 = arith.constant 0 : index
    %c0_2 = arith.constant 0 : index
    %1 = vector.load %arg2[%c0_1, %c0_2] : memref<36x128xbf16, #tpu.memory_space<vmem>>, vector<36x128xbf16>
    %cst = arith.constant dense<0.000000e+00> : vector<256x128xf32>
    %2 = tpu.matmul %0, %1, %cst {dimension_numbers = #tpu.dot_dimension_numbers<[1], [0], [0], [1], [0, 0, 1, 1], [], []>} : vector<256x36xbf16>, vector<36x128xbf16>, vector<256x128xf32> -> vector<256x128xf32>
    %c0_3 = arith.constant 0 : index
    %c0_4 = arith.constant 0 : index
    %3 = vector.load %arg3[%c0_3, %c0_4] : memref<1x128xf32, #tpu.memory_space<vmem>>, vector<1x128xf32>
    %4 = vector.broadcast %3 : vector<1x128xf32> to vector<256x128xf32>
    %5 = arith.addf %2, %4 : vector<256x128xf32>
    %cst_5 = arith.constant 0.000000e+00 : f32
    %6 = vector.broadcast %cst_5 : f32 to vector<256x128xf32>
    %7 = arith.cmpf ogt, %5, %6 : vector<256x128xf32>
    %cst_6 = arith.constant 1.000000e-01 : f32
    %8 = vector.broadcast %cst_6 : f32 to vector<256x128xf32>
    %9 = arith.mulf %8, %5 : vector<256x128xf32>
    %10 = arith.select %7, %5, %9 : vector<256x128xi1>, vector<256x128xf32>
    %c0_7 = arith.constant 0 : index
    %c0_8 = arith.constant 0 : index
    %11 = vector.load %arg4[%c0_7, %c0_8] : memref<256x128xf32, #tpu.memory_space<vmem>>, vector<256x128xf32>
    tpu.vector_store %arg4[%c0_7, %c0_8], %10 {strides = array<i32>} : memref<256x128xf32, #tpu.memory_space<vmem>>, vector<256x128xf32>,
    return
  }
  func.func @transform_0(%arg0: i32) -> (i32, i32) {
    %c0_i32 = arith.constant 0 : i32
    %c0_i32_0 = arith.constant 0 : i32
    return %arg0, %c0_i32 : i32, i32
  }
  func.func @transform_1(%arg0: i32) -> (i32, i32) {
    %c0_i32 = arith.constant 0 : i32
    %c0_i32_0 = arith.constant 0 : i32
    %c0_i32_1 = arith.constant 0 : i32
    return %c0_i32, %c0_i32_0 : i32, i32
  }
  func.func @transform_2(%arg0: i32) -> (i32, i32) {
    %c0_i32 = arith.constant 0 : i32
    %c0_i32_0 = arith.constant 0 : i32
    %c0_i32_1 = arith.constant 0 : i32
    return %c0_i32, %c0_i32_0 : i32, i32
  }
  func.func @transform_3(%arg0: i32) -> (i32, i32) {
    %c0_i32 = arith.constant 0 : i32
    %c0_i32_0 = arith.constant 0 : i32
    return %arg0, %c0_i32 : i32, i32
  }
}

</mosaic_0001>

<llo_original>
// kernel: tpu_custom_call.1
$region0: #{tpu_custom_call.1}
  #allocation0 [shape = 'u32[]', space=smem, size = 0x4, offset = 0x4, fixed_abs, tag = 'smem constant byte address 0x4 - core index']
  #allocation1 [shape = 'u32[144,128]{1,0:T(1,128)}', space=vmem, size = 0x12000, scoped, tag = 'internal scratch']
  %s0 = inlined_call_operand.vmem [shape: bf16[512,36], index: 0, kind: input, shape index: {}]
  %s1 = inlined_call_operand.vmem [shape: bf16[36,128], index: 1, kind: input, shape index: {}]
  %s2 = inlined_call_operand.vmem [shape: f32[1,128], index: 2, kind: input, shape index: {}]
  %s3 = inlined_call_operand.hbm [shape: f32[512,128], index: 3, kind: output, shape index: {}]
  %s4 = sld [smem:[#allocation0]]
  $region45: #{tpu_custom_call.1} parent=0
    _
  %s6 = ssub.s32 1, %s4
  %s7 = scalar_select 0, %s6, %s4
  $region1: #{tpu_custom_call.1} parent=0
    #allocation2 [shape = 'u8[262144]{0}', space=vmem, size = 0x40000, scoped, tag = 'output window, operand 0']
    #allocation3 [shape = 's32[2]{0}', space=sflag, size = 0x8, scoped, tag = 'scoped memory for tpu_custom_call.1']
    %8 = vsyncpa [#allocation3], 0
    %s9 = scalar_lea.sflag [#allocation3], 1
    %10 = vsyncpa %s9, 0
    loop: start=0, step=1, limit=4
    $region2: #{tpu_custom_call.1} parent=1 // loop_pre_header
      _
    $region3: #{tpu_custom_call.1} parent=1 // loop_header
      %s12 = sphi 0, %s16
      %p13 = scmp.ge.s32.totalorder %s12, 4
      %s22 = sphi 0, %s24
      %s25 = sphi 0, %s22
      %s26 = sphi 0, %s25
      %s42 = sphi 0, %s26
      %s46 = sphi 0, %s46
      %s48 = sphi 0, %s46
      %s49 = sphi 0, %s48
      %s63 = sphi 0, %s49
      %s67 = sphi 0, %s67
      %s69 = sphi 0, %s67
      %s70 = sphi 0, %s69
      %s84 = sphi 0, %s70
      %s90 = sphi 0, %s92
      %s93 = sphi 0, %s90
      %s94 = sphi 0, %s93
      %s110 = sphi 0, %s94
    $region4: #{tpu_custom_call.1} parent=1 // loop_header_branch
      %15 = sbr.rel (%p13) target = $region8
    $region5: #{tpu_custom_call.1} parent=1 // loop_body
      %s17 = ssub.s32 %s12, 1
      %s18 = ssub.s32 %s12, 2
      %s19 = sadd.s32 %s12, 1
      %s20 = ssub.s32 %s12, %s19
      %p21 = scmp.eq.s32.totalorder %s20, 0
      %s23 = sadd.s32 %s22, 1
      %s24 = scalar_select %p21, %s22, %s23
      %p27 = pneg %p21
      %p28 = scmp.eq.s32.totalorder %s12, 1
      %p29 = por %p27, %p28
      %p30 = scmp.ne.s32.totalorder %s22, %s25
      %p31 = scmp.eq.s32.totalorder %s12, 0
      %p32 = por %p30, %p31
      %p33 = scmp.ne.s32.totalorder %s22, %s25
      %p34 = scmp.eq.s32.totalorder %s17, 1
      %p35 = por %p33, %p34
      %p36 = scmp.ne.s32.totalorder %s25, %s26
      %p37 = scmp.eq.s32.totalorder %s17, 0
      %p38 = por %p36, %p37
      %p39 = scmp.ne.s32.totalorder %s25, %s26
      %p40 = scmp.eq.s32.totalorder %s18, 1
      %p41 = por %p39, %p40
      %p43 = scmp.ne.s32.totalorder %s26, %s42
      %p44 = scmp.eq.s32.totalorder %s18, 0
      %p45 = por %p43, %p44
      %s47 = sadd.s32 %s46, 1
      %p50 = scmp.eq.s32.totalorder %s12, 1
      %p51 = scmp.ne.s32.totalorder %s46, %s48
      %p52 = scmp.eq.s32.totalorder %s12, 0
      %p53 = por %p51, %p52
      %p54 = scmp.ne.s32.totalorder %s46, %s48
      %p55 = scmp.eq.s32.totalorder %s17, 1
      %p56 = por %p54, %p55
      %p57 = scmp.ne.s32.totalorder %s48, %s49
      %p58 = scmp.eq.s32.totalorder %s17, 0
      %p59 = por %p57, %p58
      %p60 = scmp.ne.s32.totalorder %s48, %s49
      %p61 = scmp.eq.s32.totalorder %s18, 1
      %p62 = por %p60, %p61
      %p64 = scmp.ne.s32.totalorder %s49, %s63
      %p65 = scmp.eq.s32.totalorder %s18, 0
      %p66 = por %p64, %p65
      %s68 = sadd.s32 %s67, 1
      %p71 = scmp.eq.s32.totalorder %s12, 1
      %p72 = scmp.ne.s32.totalorder %s67, %s69
      %p73 = scmp.eq.s32.totalorder %s12, 0
      %p74 = por %p72, %p73
      %p75 = scmp.ne.s32.totalorder %s67, %s69
      %p76 = scmp.eq.s32.totalorder %s17, 1
      %p77 = por %p75, %p76
      %p78 = scmp.ne.s32.totalorder %s69, %s70
      %p79 = scmp.eq.s32.totalorder %s17, 0
      %p80 = por %p78, %p79
      %p81 = scmp.ne.s32.totalorder %s69, %s70
      %p82 = scmp.eq.s32.totalorder %s18, 1
      %p83 = por %p81, %p82
      %p85 = scmp.ne.s32.totalorder %s70, %s84
      %p86 = scmp.eq.s32.totalorder %s18, 0
      %p87 = por %p85, %p86
      %s88 = ssub.s32 %s12, %s19
      %p89 = scmp.eq.s32.totalorder %s88, 0
      %s91 = sadd.s32 %s90, 1
      %s92 = scalar_select %p89, %s90, %s91
      %p95 = pneg %p89
      %p96 = scmp.eq.s32.totalorder %s12, 1
      %p97 = por %p95, %p96
      %p98 = scmp.ne.s32.totalorder %s90, %s93
      %p99 = scmp.eq.s32.totalorder %s12, 0
      %p100 = por %p98, %p99
      %p101 = scmp.ne.s32.totalorder %s90, %s93
      %p102 = scmp.eq.s32.totalorder %s17, 1
      %p103 = por %p101, %p102
      %p104 = scmp.ne.s32.totalorder %s93, %s94
      %p105 = scmp.eq.s32.totalorder %s17, 0
      %p106 = por %p104, %p105
      %p107 = scmp.ne.s32.totalorder %s93, %s94
      %p108 = scmp.eq.s32.totalorder %s18, 1
      %p109 = por %p107, %p108
      %p111 = scmp.ne.s32.totalorder %s94, %s110
      %p112 = scmp.eq.s32.totalorder %s18, 0
      %p113 = por %p111, %p112
      %p114 = scmp.le.s32.totalorder 1, %s12
      %p115 = scmp.lt.s32.totalorder %s12, 3
      %p116 = pnand %p114, %p115
      %p117 = pneg %p116
      // Predicated region
      $region9: #{tpu_custom_call.1} parent=5 // pred_check
        _
      $region10: #{tpu_custom_call.1} parent=5 // pred_check_branch
        %119 = sbr.rel (%p116) target = $region12
      $region11: #{tpu_custom_call.1} parent=5 // pred_region
        %s120 = ssub.s32 %s12, 1
        // Predicated region
        $region13: #{tpu_custom_call.1} parent=11 // pred_check
          %p121 = pneg %p59
        $region14: #{tpu_custom_call.1} parent=11 // pred_check_branch
          %123 = sbr.rel (%p121) target = $region16
        $region15: #{tpu_custom_call.1} parent=11 // pred_region
          _
        $region16: #{tpu_custom_call.1} parent=11 // pred_fallthru
          _
        // Predicated region
        $region17: #{tpu_custom_call.1} parent=11 // pred_check
          %p124 = pneg %p80
        $region18: #{tpu_custom_call.1} parent=11 // pred_check_branch
          %126 = sbr.rel (%p124) target = $region20
        $region19: #{tpu_custom_call.1} parent=11 // pred_region
          _
        $region20: #{tpu_custom_call.1} parent=11 // pred_fallthru
          _
      $region12: #{tpu_custom_call.1} parent=5 // pred_fallthru
        _
      %p127 = scmp.lt.s32.totalorder %s12, 2
      // Predicated region
      $region21: #{tpu_custom_call.1} parent=5 // pred_check
        %p128 = pneg %p127
      $region22: #{tpu_custom_call.1} parent=5 // pred_check_branch
        %130 = sbr.rel (%p128) target = $region24
      $region23: #{tpu_custom_call.1} parent=5 // pred_region
        // Predicated region
        $region25: #{tpu_custom_call.1} parent=23 // pred_check
          %p131 = pneg %p32
        $region26: #{tpu_custom_call.1} parent=23 // pred_check_branch
          %133 = sbr.rel (%p131) target = $region28
        $region27: #{tpu_custom_call.1} parent=23 // pred_region
          %s134 = smul.u32 32, %s12
          %p135 = scmp.lt.s32.totalorder %s134, 63
          %s136 = scalar_select %p135, %s134, 63
          %s137 = smul.addr %s136, 4
          %s138 = scalar_lea.vmem %s0, %s137
          %s139 = smul.u32 32, %s12
        $region28: #{tpu_custom_call.1} parent=23 // pred_fallthru
          _
      $region24: #{tpu_custom_call.1} parent=5 // pred_fallthru
        _
      %p140 = scmp.le.s32.totalorder 1, %s12
      %p141 = scmp.lt.s32.totalorder %s12, 3
      %p142 = pnand %p140, %p141
      %p143 = pneg %p142
      // Predicated region
      $region29: #{tpu_custom_call.1} parent=5 // pred_check
        _
      $region30: #{tpu_custom_call.1} parent=5 // pred_check_branch
        %145 = sbr.rel (%p142) target = $region32
      $region31: #{tpu_custom_call.1} parent=5 // pred_region
        %s146 = ssub.s32 %s12, 1
        %s147 = smul.u32 32, %s17
        %p148 = scmp.lt.s32.totalorder %s147, 63
        %s149 = scalar_select %p148, %s147, 63
        %s150 = smul.addr %s149, 4
        %s151 = scalar_lea.vmem %s0, %s150
        %p152 = pneg %p38
        %p153 = pneg %p35
        %p154 = pneg %p59
        %p155 = pneg %p56
        %p156 = pneg %p80
        %p157 = pneg %p77
        %p158 = pneg %p106
        %p159 = pneg %p103
        %s160 = sand.u32 %s93, 1
        %s161 = scalar_lea.sflag [#allocation3], %s160
        %s162 = sand.u32 %s93, 1
        %s163 = smul.addr %s162, 256
        %s164 = scalar_lea.vmem [#allocation2], %s163
        %s165 = smul.u32 32, %s17
        %p166 = scmp.lt.s32.totalorder %s165, 63
        %s167 = scalar_select %p166, %s165, 63
        %s168 = smul.addr %s167, 4
        %s169 = scalar_lea.vmem %s0, %s168
        %s170 = smul.u32 32, %s17
        %s171 = smul.u32 32, %s17
        %v173 = vld [vmem:[%s169] sm:$0xf]
        %v174 = vld [vmem:[%s169 + $0x4] sm:$0xf]
        %v175 = vld [vmem:[%s169 + $0x8] sm:$0xf]
        %v176 = vld [vmem:[%s169 + $0xc] sm:$0xf]
        %v177 = vld [vmem:[%s169 + $0x10] sm:$0xf]
        %v178 = vld [vmem:[%s169 + $0x14] sm:$0xf]
        %v179 = vld [vmem:[%s169 + $0x18] sm:$0xf]
        %v180 = vld [vmem:[%s169 + $0x1c] sm:$0xf]
        %v181 = vld [vmem:[%s169 + $0x20] sm:$0xf]
        %v182 = vld [vmem:[%s169 + $0x24] sm:$0xf]
        %v183 = vld [vmem:[%s169 + $0x28] sm:$0xf]
        %v184 = vld [vmem:[%s169 + $0x2c] sm:$0xf]
        %v185 = vld [vmem:[%s169 + $0x30] sm:$0xf]
        %v186 = vld [vmem:[%s169 + $0x34] sm:$0xf]
        %v187 = vld [vmem:[%s169 + $0x38] sm:$0xf]
        %v188 = vld [vmem:[%s169 + $0x3c] sm:$0xf]
        %v189 = vld [vmem:[%s169 + $0x40] sm:$0xf]
        %v190 = vld [vmem:[%s169 + $0x44] sm:$0xf]
        %v191 = vld [vmem:[%s169 + $0x48] sm:$0xf]
        %v192 = vld [vmem:[%s169 + $0x4c] sm:$0xf]
        %v193 = vld [vmem:[%s169 + $0x50] sm:$0xf]
        %v194 = vld [vmem:[%s169 + $0x54] sm:$0xf]
        %v195 = vld [vmem:[%s169 + $0x58] sm:$0xf]
        %v196 = vld [vmem:[%s169 + $0x5c] sm:$0xf]
        %v197 = vld [vmem:[%s169 + $0x60] sm:$0xf]
        %v198 = vld [vmem:[%s169 + $0x64] sm:$0xf]
        %v199 = vld [vmem:[%s169 + $0x68] sm:$0xf]
        %v200 = vld [vmem:[%s169 + $0x6c] sm:$0xf]
        %v201 = vld [vmem:[%s169 + $0x70] sm:$0xf]
        %v202 = vld [vmem:[%s169 + $0x74] sm:$0xf]
        %v203 = vld [vmem:[%s169 + $0x78] sm:$0xf]
        %v204 = vld [vmem:[%s169 + $0x7c] sm:$0xf]
        %v205 = vld [vmem:[%s1] sm:$0xf]
        %v206 = vld [vmem:[%s1 + $0x4] sm:$0xf]
        %v207 = vld [vmem:[%s1 + $0x8] sm:$0xf]
        %v208 = vld [vmem:[%s1 + $0xc] sm:$0xf]
        %v209 = vld [vmem:[%s1 + $0x10] sm:$0x3]
        %v210 = vld [vmem:[%s2] sm:$0x1]
        %v212 = vlaneseq
        %v213 = vshrl.u32 %v212, 7
        %v214 = vsub.s32 0, %v213
        %v215 = vrot.slane %v210, %v214
        %v249 = vunpack.c.l.b16 %v173
        %v250 = vunpack.c.l.b16 %v174
        %v251 = vunpack.c.l.b16 %v175
        %v252 = vunpack.c.l.b16 %v176
        %v253 = vunpack.c.l.b16 %v177
        %v254 = vunpack.c.l.b16 %v178
        %v255 = vunpack.c.l.b16 %v179
        %v256 = vunpack.c.l.b16 %v180
        %v257 = vunpack.c.l.b16 %v181
        %v258 = vunpack.c.l.b16 %v182
        %v259 = vunpack.c.l.b16 %v183
        %v260 = vunpack.c.l.b16 %v184
        %v261 = vunpack.c.l.b16 %v185
        %v262 = vunpack.c.l.b16 %v186
        %v263 = vunpack.c.l.b16 %v187
        %v264 = vunpack.c.l.b16 %v188
        %v265 = vunpack.c.l.b16 %v189
        %v266 = vunpack.c.l.b16 %v190
        %v267 = vunpack.c.l.b16 %v191
        %v268 = vunpack.c.l.b16 %v192
        %v269 = vunpack.c.l.b16 %v193
        %v270 = vunpack.c.l.b16 %v194
        %v271 = vunpack.c.l.b16 %v195
        %v272 = vunpack.c.l.b16 %v196
        %v273 = vunpack.c.l.b16 %v197
        %v274 = vunpack.c.l.b16 %v198
        %v275 = vunpack.c.l.b16 %v199
        %v276 = vunpack.c.l.b16 %v200
        %v277 = vunpack.c.l.b16 %v201
        %v278 = vunpack.c.l.b16 %v202
        %v279 = vunpack.c.l.b16 %v203
        %v280 = vunpack.c.l.b16 %v204
        %v281 = vpack.c.b16 %v250, %v249
        %v282 = vpack.c.b16 %v252, %v251
        %v283 = vpack.c.b16 %v254, %v253
        %v284 = vpack.c.b16 %v256, %v255
        %v285 = vpack.c.b16 %v258, %v257
        %v286 = vpack.c.b16 %v260, %v259
        %v287 = vpack.c.b16 %v262, %v261
        %v288 = vpack.c.b16 %v264, %v263
        %v289 = vpack.c.b16 %v266, %v265
        %v290 = vpack.c.b16 %v268, %v267
        %v291 = vpack.c.b16 %v270, %v269
        %v292 = vpack.c.b16 %v272, %v271
        %v293 = vpack.c.b16 %v274, %v273
        %v294 = vpack.c.b16 %v276, %v275
        %v295 = vpack.c.b16 %v278, %v277
        %v296 = vpack.c.b16 %v280, %v279
        %v302 = vunpack.c.l.b16 %v205
        %v303 = vunpack.c.l.b16 %v206
        %v304 = vunpack.c.l.b16 %v207
        %v305 = vunpack.c.l.b16 %v208
        %v306 = vunpack.c.l.b16 %v209
        %v307 = vpack.c.b16 %v303, %v302
        %v308 = vpack.c.b16 %v305, %v304
        %v309 = vpack.c.b16 %v306, %v306
        %vm312 = vcmask 293888
        %v314 = vsel %vm312, %v281, 0
        %v317 = vsel %vm312, %v282, 0
        %v320 = vsel %vm312, %v283, 0
        %v323 = vsel %vm312, %v284, 0
        %v326 = vsel %vm312, %v285, 0
        %v329 = vsel %vm312, %v286, 0
        %v332 = vsel %vm312, %v287, 0
        %v335 = vsel %vm312, %v288, 0
        %v338 = vsel %vm312, %v289, 0
        %v341 = vsel %vm312, %v290, 0
        %v344 = vsel %vm312, %v291, 0
        %v347 = vsel %vm312, %v292, 0
        %v350 = vsel %vm312, %v293, 0
        %v353 = vsel %vm312, %v294, 0
        %v356 = vsel %vm312, %v295, 0
        %v359 = vsel %vm312, %v296, 0
        %vm361 = vcmask 1041408
        %v363 = vsel %vm361, %v309, 0
        %365 = vmatprep.subr.bf16.mxu0 0
        %366 = vmatpush1.bf16.msra.mxu0 %v307
        %367 = vmatprep.subr.bf16.mxu0 0
        %368 = vmatpush1.bf16.msra.mxu0 %v308
        %369 = vmatprep.subr.bf16.mxu0 0
        %370 = vmatpush1.bf16.msra.mxu0 %v363
        %371 = vmatprep.subr.bf16.mxu0 0
        %372 = vmatpush1.bf16.msra.mxu0 0
        %373 = vmatprep.subr.bf16.mxu0 0
        %374 = vmatpush1.bf16.msra.mxu0 0
        %375 = vmatprep.subr.bf16.mxu0 0
        %376 = vmatpush1.bf16.msra.mxu0 0
        %377 = vmatprep.subr.bf16.mxu0 0
        %378 = vmatpush1.bf16.msra.mxu0 0
        %379 = vmatprep.subr.bf16.mxu0 0
        %380 = vmatpush1.bf16.msra.mxu0 0
        %381 = vmatprep.subr.bf16.mxu0 0
        %382 = vmatpush1.bf16.msra.mxu0 0
        %383 = vmatprep.subr.bf16.mxu0 0
        %384 = vmatpush1.bf16.msra.mxu0 0
        %385 = vmatprep.subr.bf16.mxu0 0
        %386 = vmatpush1.bf16.msra.mxu0 0
        %387 = vmatprep.subr.bf16.mxu0 0
        %388 = vmatpush1.bf16.msra.mxu0 0
        %389 = vmatprep.subr.bf16.mxu0 0
        %390 = vmatpush1.bf16.msra.mxu0 0
        %391 = vmatprep.subr.bf16.mxu0 0
        %392 = vmatpush1.bf16.msra.mxu0 0
        %393 = vmatprep.subr.bf16.mxu0 0
        %394 = vmatpush1.bf16.msra.mxu0 0
        %395 = vmatprep.subr.bf16.mxu0 0
        %396 = vmatpush1.bf16.msra.mxu0 0
        %397 = vmatprep.mubr.bf16.mxu0 0
        %398 = vmatmul.mubr.bf16.gmra.mrb[0].mxu0 %v314
        %v399 = vpop.f32.mrb[0].mxu0
        %v400 = vadd.f32 %v215, %v399
        %v401 = vpop.f32.mrb[0].mxu0
        %v402 = vpop.f32.mrb[0].mxu0
        %v403 = vadd.f32 %v215, %v402
        %v404 = vpop.f32.mrb[0].mxu0
        %405 = vmatprep.mubr.bf16.mxu0 0
        %406 = vmatmul.mubr.bf16.gmra.mrb[0].mxu0 %v317
        %v407 = vpop.f32.mrb[0].mxu0
        %v408 = vadd.f32 %v215, %v407
        %v409 = vpop.f32.mrb[0].mxu0
        %v410 = vpop.f32.mrb[0].mxu0
        %v411 = vadd.f32 %v215, %v410
        %v412 = vpop.f32.mrb[0].mxu0
        %413 = vmatprep.mubr.bf16.mxu0 0
        %414 = vmatmul.mubr.bf16.gmra.mrb[0].mxu0 %v320
        %v415 = vpop.f32.mrb[0].mxu0
        %v416 = vadd.f32 %v215, %v415
        %v417 = vpop.f32.mrb[0].mxu0
        %v418 = vpop.f32.mrb[0].mxu0
        %v419 = vadd.f32 %v215, %v418
        %v420 = vpop.f32.mrb[0].mxu0
        %421 = vmatprep.mubr.bf16.mxu0 0
        %422 = vmatmul.mubr.bf16.gmra.mrb[0].mxu0 %v323
        %v423 = vpop.f32.mrb[0].mxu0
        %v424 = vadd.f32 %v215, %v423
        %v425 = vpop.f32.mrb[0].mxu0
        %v426 = vpop.f32.mrb[0].mxu0
        %v427 = vadd.f32 %v215, %v426
        %v428 = vpop.f32.mrb[0].mxu0
        %429 = vmatprep.mubr.bf16.mxu0 0
        %430 = vmatmul.mubr.bf16.gmra.mrb[0].mxu0 %v326
        %v431 = vpop.f32.mrb[0].mxu0
        %v432 = vadd.f32 %v215, %v431
        %v433 = vpop.f32.mrb[0].mxu0
        %v434 = vpop.f32.mrb[0].mxu0
        %v435 = vadd.f32 %v215, %v434
        %v436 = vpop.f32.mrb[0].mxu0
        %437 = vmatprep.mubr.bf16.mxu0 0
        %438 = vmatmul.mubr.bf16.gmra.mrb[0].mxu0 %v329
        %v439 = vpop.f32.mrb[0].mxu0
        %v440 = vadd.f32 %v215, %v439
        %v441 = vpop.f32.mrb[0].mxu0
        %v442 = vpop.f32.mrb[0].mxu0
        %v443 = vadd.f32 %v215, %v442
        %v444 = vpop.f32.mrb[0].mxu0
        %445 = vmatprep.mubr.bf16.mxu0 0
        %446 = vmatmul.mubr.bf16.gmra.mrb[0].mxu0 %v332
        %v447 = vpop.f32.mrb[0].mxu0
        %v448 = vadd.f32 %v215, %v447
        %v449 = vpop.f32.mrb[0].mxu0
        %v450 = vpop.f32.mrb[0].mxu0
        %v451 = vadd.f32 %v215, %v450
        %v452 = vpop.f32.mrb[0].mxu0
        %453 = vmatprep.mubr.bf16.mxu0 0
        %454 = vmatmul.mubr.bf16.gmra.mrb[0].mxu0 %v335
        %v455 = vpop.f32.mrb[0].mxu0
        %v456 = vadd.f32 %v215, %v455
        %v457 = vpop.f32.mrb[0].mxu0
        %v458 = vpop.f32.mrb[0].mxu0
        %v459 = vadd.f32 %v215, %v458
        %v460 = vpop.f32.mrb[0].mxu0
        %461 = vmatprep.mubr.bf16.mxu0 0
        %462 = vmatmul.mubr.bf16.gmra.mrb[0].mxu0 %v338
        %v463 = vpop.f32.mrb[0].mxu0
        %v464 = vadd.f32 %v215, %v463
        %v465 = vpop.f32.mrb[0].mxu0
        %v466 = vpop.f32.mrb[0].mxu0
        %v467 = vadd.f32 %v215, %v466
        %v468 = vpop.f32.mrb[0].mxu0
        %469 = vmatprep.mubr.bf16.mxu0 0
        %470 = vmatmul.mubr.bf16.gmra.mrb[0].mxu0 %v341
        %v471 = vpop.f32.mrb[0].mxu0
        %v472 = vadd.f32 %v215, %v471
        %v473 = vpop.f32.mrb[0].mxu0
        %v474 = vpop.f32.mrb[0].mxu0
        %v475 = vadd.f32 %v215, %v474
        %v476 = vpop.f32.mrb[0].mxu0
        %477 = vmatprep.mubr.bf16.mxu0 0
        %478 = vmatmul.mubr.bf16.gmra.mrb[0].mxu0 %v344
        %v479 = vpop.f32.mrb[0].mxu0
        %v480 = vadd.f32 %v215, %v479
        %v481 = vpop.f32.mrb[0].mxu0
        %v482 = vpop.f32.mrb[0].mxu0
        %v483 = vadd.f32 %v215, %v482
        %v484 = vpop.f32.mrb[0].mxu0
        %485 = vmatprep.mubr.bf16.mxu0 0
        %486 = vmatmul.mubr.bf16.gmra.mrb[0].mxu0 %v347
        %v487 = vpop.f32.mrb[0].mxu0
        %v488 = vadd.f32 %v215, %v487
        %v489 = vpop.f32.mrb[0].mxu0
        %v490 = vpop.f32.mrb[0].mxu0
        %v491 = vadd.f32 %v215, %v490
        %v492 = vpop.f32.mrb[0].mxu0
        %493 = vmatprep.mubr.bf16.mxu0 0
        %494 = vmatmul.mubr.bf16.gmra.mrb[0].mxu0 %v350
        %v495 = vpop.f32.mrb[0].mxu0
        %v496 = vadd.f32 %v215, %v495
        %v497 = vpop.f32.mrb[0].mxu0
        %v498 = vpop.f32.mrb[0].mxu0
        %v499 = vadd.f32 %v215, %v498
        %v500 = vpop.f32.mrb[0].mxu0
        %501 = vmatprep.mubr.bf16.mxu0 0
        %502 = vmatmul.mubr.bf16.gmra.mrb[0].mxu0 %v353
        %v503 = vpop.f32.mrb[0].mxu0
        %v504 = vadd.f32 %v215, %v503
        %v505 = vpop.f32.mrb[0].mxu0
        %v506 = vpop.f32.mrb[0].mxu0
        %v507 = vadd.f32 %v215, %v506
        %v508 = vpop.f32.mrb[0].mxu0
        %509 = vmatprep.mubr.bf16.mxu0 0
        %510 = vmatmul.mubr.bf16.gmra.mrb[0].mxu0 %v356
        %v511 = vpop.f32.mrb[0].mxu0
        %v512 = vadd.f32 %v215, %v511
        %v513 = vpop.f32.mrb[0].mxu0
        %v514 = vpop.f32.mrb[0].mxu0
        %v515 = vadd.f32 %v215, %v514
        %v516 = vpop.f32.mrb[0].mxu0
        %517 = vmatprep.mubr.bf16.mxu0 0
        %518 = vmatmul.mubr.bf16.gmra.mrb[0].mxu0 %v359
        %v519 = vpop.f32.mrb[0].mxu0
        %v520 = vadd.f32 %v215, %v519
        %v521 = vpop.f32.mrb[0].mxu0
        %v522 = vpop.f32.mrb[0].mxu0
        %v523 = vadd.f32 %v215, %v522
        %v524 = vpop.f32.mrb[0].mxu0
        %525 = vdwg.mxu0
        %vm526 = vcmp.gt.f32.partialorder %v400, 0.0
        %vm527 = vcmp.gt.f32.partialorder %v403, 0.0
        %vm528 = vcmp.gt.f32.partialorder %v408, 0.0
        %vm529 = vcmp.gt.f32.partialorder %v411, 0.0
        %vm530 = vcmp.gt.f32.partialorder %v416, 0.0
        %vm531 = vcmp.gt.f32.partialorder %v419, 0.0
        %vm532 = vcmp.gt.f32.partialorder %v424, 0.0
        %vm533 = vcmp.gt.f32.partialorder %v427, 0.0
        %vm534 = vcmp.gt.f32.partialorder %v432, 0.0
        %vm535 = vcmp.gt.f32.partialorder %v435, 0.0
        %vm536 = vcmp.gt.f32.partialorder %v440, 0.0
        %vm537 = vcmp.gt.f32.partialorder %v443, 0.0
        %vm538 = vcmp.gt.f32.partialorder %v448, 0.0
        %vm539 = vcmp.gt.f32.partialorder %v451, 0.0
        %vm540 = vcmp.gt.f32.partialorder %v456, 0.0
        %vm541 = vcmp.gt.f32.partialorder %v459, 0.0
        %vm542 = vcmp.gt.f32.partialorder %v464, 0.0
        %vm543 = vcmp.gt.f32.partialorder %v467, 0.0
        %vm544 = vcmp.gt.f32.partialorder %v472, 0.0
        %vm545 = vcmp.gt.f32.partialorder %v475, 0.0
        %vm546 = vcmp.gt.f32.partialorder %v480, 0.0
        %vm547 = vcmp.gt.f32.partialorder %v483, 0.0
        %vm548 = vcmp.gt.f32.partialorder %v488, 0.0
        %vm549 = vcmp.gt.f32.partialorder %v491, 0.0
        %vm550 = vcmp.gt.f32.partialorder %v496, 0.0
        %vm551 = vcmp.gt.f32.partialorder %v499, 0.0
        %vm552 = vcmp.gt.f32.partialorder %v504, 0.0
        %vm553 = vcmp.gt.f32.partialorder %v507, 0.0
        %vm554 = vcmp.gt.f32.partialorder %v512, 0.0
        %vm555 = vcmp.gt.f32.partialorder %v515, 0.0
        %vm556 = vcmp.gt.f32.partialorder %v520, 0.0
        %vm557 = vcmp.gt.f32.partialorder %v523, 0.0
        %v558 = vmul.f32 %v400, 0.1
        %v559 = vmul.f32 %v403, 0.1
        %v560 = vmul.f32 %v408, 0.1
        %v561 = vmul.f32 %v411, 0.1
        %v562 = vmul.f32 %v416, 0.1
        %v563 = vmul.f32 %v419, 0.1
        %v564 = vmul.f32 %v424, 0.1
        %v565 = vmul.f32 %v427, 0.1
        %v566 = vmul.f32 %v432, 0.1
        %v567 = vmul.f32 %v435, 0.1
        %v568 = vmul.f32 %v440, 0.1
        %v569 = vmul.f32 %v443, 0.1
        %v570 = vmul.f32 %v448, 0.1
        %v571 = vmul.f32 %v451, 0.1
        %v572 = vmul.f32 %v456, 0.1
        %v573 = vmul.f32 %v459, 0.1
        %v574 = vmul.f32 %v464, 0.1
        %v575 = vmul.f32 %v467, 0.1
        %v576 = vmul.f32 %v472, 0.1
        %v577 = vmul.f32 %v475, 0.1
        %v578 = vmul.f32 %v480, 0.1
        %v579 = vmul.f32 %v483, 0.1
        %v580 = vmul.f32 %v488, 0.1
        %v581 = vmul.f32 %v491, 0.1
        %v582 = vmul.f32 %v496, 0.1
        %v583 = vmul.f32 %v499, 0.1
        %v584 = vmul.f32 %v504, 0.1
        %v585 = vmul.f32 %v507, 0.1
        %v586 = vmul.f32 %v512, 0.1
        %v587 = vmul.f32 %v515, 0.1
        %v588 = vmul.f32 %v520, 0.1
        %v589 = vmul.f32 %v523, 0.1
        %v590 = vsel %vm526, %v400, %v558
        %v591 = vsel %vm527, %v403, %v559
        %v592 = vsel %vm528, %v408, %v560
        %v593 = vsel %vm529, %v411, %v561
        %v594 = vsel %vm530, %v416, %v562
        %v595 = vsel %vm531, %v419, %v563
        %v596 = vsel %vm532, %v424, %v564
        %v597 = vsel %vm533, %v427, %v565
        %v598 = vsel %vm534, %v432, %v566
        %v599 = vsel %vm535, %v435, %v567
        %v600 = vsel %vm536, %v440, %v568
        %v601 = vsel %vm537, %v443, %v569
        %v602 = vsel %vm538, %v448, %v570
        %v603 = vsel %vm539, %v451, %v571
        %v604 = vsel %vm540, %v456, %v572
        %v605 = vsel %vm541, %v459, %v573
        %v606 = vsel %vm542, %v464, %v574
        %v607 = vsel %vm543, %v467, %v575
        %v608 = vsel %vm544, %v472, %v576
        %v609 = vsel %vm545, %v475, %v577
        %v610 = vsel %vm546, %v480, %v578
        %v611 = vsel %vm547, %v483, %v579
        %v612 = vsel %vm548, %v488, %v580
        %v613 = vsel %vm549, %v491, %v581
        %v614 = vsel %vm550, %v496, %v582
        %v615 = vsel %vm551, %v499, %v583
        %v616 = vsel %vm552, %v504, %v584
        %v617 = vsel %vm553, %v507, %v585
        %v618 = vsel %vm554, %v512, %v586
        %v619 = vsel %vm555, %v515, %v587
        %v620 = vsel %vm556, %v520, %v588
        %v621 = vsel %vm557, %v523, %v589
        %622 = vst [vmem:[%s164] sm:$0xff] %v590
        %623 = vst [vmem:[%s164 + $0x8] sm:$0xff] %v591
        %624 = vst [vmem:[%s164 + $0x10] sm:$0xff] %v592
        %625 = vst [vmem:[%s164 + $0x18] sm:$0xff] %v593
        %626 = vst [vmem:[%s164 + $0x20] sm:$0xff] %v594
        %627 = vst [vmem:[%s164 + $0x28] sm:$0xff] %v595
        %628 = vst [vmem:[%s164 + $0x30] sm:$0xff] %v596
        %629 = vst [vmem:[%s164 + $0x38] sm:$0xff] %v597
        %630 = vst [vmem:[%s164 + $0x40] sm:$0xff] %v598
        %631 = vst [vmem:[%s164 + $0x48] sm:$0xff] %v599
        %632 = vst [vmem:[%s164 + $0x50] sm:$0xff] %v600
        %633 = vst [vmem:[%s164 + $0x58] sm:$0xff] %v601
        %634 = vst [vmem:[%s164 + $0x60] sm:$0xff] %v602
        %635 = vst [vmem:[%s164 + $0x68] sm:$0xff] %v603
        %636 = vst [vmem:[%s164 + $0x70] sm:$0xff] %v604
        %637 = vst [vmem:[%s164 + $0x78] sm:$0xff] %v605
        %638 = vst [vmem:[%s164 + $0x80] sm:$0xff] %v606
        %639 = vst [vmem:[%s164 + $0x88] sm:$0xff] %v607
        %640 = vst [vmem:[%s164 + $0x90] sm:$0xff] %v608
        %641 = vst [vmem:[%s164 + $0x98] sm:$0xff] %v609
        %642 = vst [vmem:[%s164 + $0xa0] sm:$0xff] %v610
        %643 = vst [vmem:[%s164 + $0xa8] sm:$0xff] %v611
        %644 = vst [vmem:[%s164 + $0xb0] sm:$0xff] %v612
        %645 = vst [vmem:[%s164 + $0xb8] sm:$0xff] %v613
        %646 = vst [vmem:[%s164 + $0xc0] sm:$0xff] %v614
        %647 = vst [vmem:[%s164 + $0xc8] sm:$0xff] %v615
        %648 = vst [vmem:[%s164 + $0xd0] sm:$0xff] %v616
        %649 = vst [vmem:[%s164 + $0xd8] sm:$0xff] %v617
        %650 = vst [vmem:[%s164 + $0xe0] sm:$0xff] %v618
        %651 = vst [vmem:[%s164 + $0xe8] sm:$0xff] %v619
        %652 = vst [vmem:[%s164 + $0xf0] sm:$0xff] %v620
        %653 = vst [vmem:[%s164 + $0xf8] sm:$0xff] %v621
        %s654 = sand.u32 %s93, 1
        %s655 = scalar_lea.sflag [#allocation3], %s654
        %s656 = sand.u32 %s93, 1
        %s657 = smul.addr %s656, 256
        %s658 = scalar_lea.vmem [#allocation2], %s657
        // Predicated region
        $region33: #{tpu_custom_call.1} parent=31 // pred_check
          %p659 = pneg %p103
        $region34: #{tpu_custom_call.1} parent=31 // pred_check_branch
          %661 = sbr.rel (%p659) target = $region36
        $region35: #{tpu_custom_call.1} parent=31 // pred_region
          %s662 = smul.u32 32, %s17
          %s664 = ssub.s32 4096, 4096
          %665 = vsyncadd %s655, %s664
          %s666 = smul.addr %s662, 128
          %s667 = scalar_lea.hbm %s3, %s666
          %s668 = sshll.u32 %s658, 4
          %s669 = int_to_ptr.vmem [resolvable:$true] %s668
          %674 = dma.vmem_to_hbm [thread:$0]  %s669, 4096, %s667, %s655, 128, 128, 8
        $region36: #{tpu_custom_call.1} parent=31 // pred_fallthru
          _
      $region32: #{tpu_custom_call.1} parent=5 // pred_fallthru
        _
      %p675 = scmp.le.s32.totalorder 2, %s12
      // Predicated region
      $region37: #{tpu_custom_call.1} parent=5 // pred_check
        %p676 = pneg %p675
      $region38: #{tpu_custom_call.1} parent=5 // pred_check_branch
        %678 = sbr.rel (%p676) target = $region40
      $region39: #{tpu_custom_call.1} parent=5 // pred_region
        %s679 = ssub.s32 %s12, 2
        // Predicated region
        $region41: #{tpu_custom_call.1} parent=39 // pred_check
          %p680 = pneg %p109
        $region42: #{tpu_custom_call.1} parent=39 // pred_check_branch
          %682 = sbr.rel (%p680) target = $region44
        $region43: #{tpu_custom_call.1} parent=39 // pred_region
          %s683 = sand.u32 %s94, 1
          %s684 = scalar_lea.sflag [#allocation3], %s683
          %s685 = sand.u32 %s94, 1
          %s686 = smul.addr %s685, 256
          %s687 = scalar_lea.vmem [#allocation2], %s686
          %688 = dma.done %s684, 4096
        $region44: #{tpu_custom_call.1} parent=39 // pred_fallthru
          _
      $region40: #{tpu_custom_call.1} parent=5 // pred_fallthru
        _
    $region6: #{tpu_custom_call.1} parent=1 // loop_footer
      %s16 = sadd.s32 1, %s12
    $region7: #{tpu_custom_call.1} parent=1 // loop_footer_branch
      %11 = sbr.rel target = $region3
    $region8: #{tpu_custom_call.1} parent=1 // loop_exit
      _
    %689 = vsyncpa [#allocation3], 1
    %s690 = scalar_lea.sflag [#allocation3], 1
    %691 = vsyncpa %s690, 1

</llo_original>
